<compile_context>
chip_gen: v7x
topology: tpu7x:2x2x1
jax: 0.10.0
libtpu: 0.0.40
codegen_flags: <defaults>
</compile_context>

<pallas_src>
import functools

import jax
import jax.numpy as jnp
from jax.experimental import pallas as pl
from jax.experimental.pallas import tpu as pltpu

# --- model config (mirrors the PyTorch module) -------------------------------
HIDDEN_DIM = 64
LAYER_DIM = 3
OUTPUT_DIM = 1   # fc head implemented as a lane reduction (requires OUTPUT_DIM == 1)


def rnn_wavefront_kernel(drive_ref, w_blk_ref, w_fc_ref, b_fc_ref, out_ref, *,
                         num_steps):
    """Serial wavefront recurrence over the stacked RNN.

    drive_ref : (num_steps, Bp, L*H) per-wavefront-step additive input:
                  lanes [0:H)          = x[t] @ W_ih0 + b0   (t = step; 0 for t >= T)
                  lanes [l*H:(l+1)*H)  = b_ih[l] + b_hh[l]   (0 while layer l inactive)
    w_blk_ref : (L*H, L*H)  block-banded weights: W_hh[l]^T at block (l, l),
                  W_ih[l]^T at block (l-1, l), zeros elsewhere.
    w_fc_ref  : (1, L*H)    fc weight, zero-padded outside the top layer's lanes
    b_fc_ref  : (1, 1)      fc bias
    out_ref   : (Bp, 1)     output
    """
    w_blk = w_blk_ref[...]            # hoisted: loaded once, stays in vregs

    # Step 0: every hidden state is zero, so the recurrent matmul is identically
    # zero and tanh(drive[0]) is the exact state (layer 0 gets h_0, layers 1..
    # stay 0 because their drive lanes are zeroed).
    h = jnp.tanh(drive_ref[0])                                       # (Bp, L*H)

    # Steady wavefront: 1 lane-dense matmul + 1 wide tanh on the critical path
    # per step.  Layer l of the block result corresponds to timestep w - l.
    for w in range(1, num_steps):
        h = jnp.tanh(drive_ref[w]
                     + jnp.dot(h, w_blk, preferred_element_type=jnp.float32))

    # fc head on the top layer's last-timestep hidden state (== out[:, -1, :]):
    # VPU multiply + cross-lane (XLU) reduction.  The zero-padded fc lanes kill
    # the stale layer-0/1 lanes of h, so nothing but h_top reaches the output.
    out_ref[...] = (jnp.sum(h * w_fc_ref[...], axis=-1, keepdims=True)
                    + b_fc_ref[...])


@jax.jit
def rnn_model_forward(x, params):
    """Pallas equivalent of RNNModel.forward (inference). x: (B, T, D)."""
    w_ih0, w_ihL, w_hh, b, w_fc, b_fc = params
    B, T, _ = x.shape
    H, L = HIDDEN_DIM, LAYER_DIM
    Bp = ((B + 7) // 8) * 8          # sublane-align the batch
    num_steps = T + L - 1            # wavefront length

    x_p = jnp.pad(x, ((0, Bp - B), (0, 0), (0, 0)))

    # Hoisted layer-0 input projection (+ bias) for every timestep, time-major.
    # One XLA matmul; the batch_first -> time-major transpose is fused into the
    # contraction (no standalone relayout pass over x in HBM).
    pre0 = jnp.einsum('btd,dh->tbh', x_p, w_ih0) + b[0]              # (T, Bp, H)

    # Per-step drive slab.  Bias lanes of a layer are zero until that layer's
    # wavefront becomes active, which freezes its state at exactly 0 without any
    # in-kernel masking; layer-0 lanes are zero for the tail steps (t >= T).
    drive = jnp.zeros((num_steps, Bp, L * H), jnp.float32)
    drive = drive.at[:T, :, 0:H].set(pre0)
    for l in range(1, L):
        drive = drive.at[l:, :, l * H:(l + 1) * H].set(b[l])

    # Block-banded recurrent weight: one lane-dense K=N=192 MXU op per step
    # (fits a single 256-wide MXU issue on v6e/v7x).
    w_blk = jnp.zeros((L * H, L * H), jnp.float32)
    for l in range(L):
        w_blk = w_blk.at[l * H:(l + 1) * H, l * H:(l + 1) * H].set(w_hh[l])
        if l > 0:
            w_blk = w_blk.at[(l - 1) * H:l * H, l * H:(l + 1) * H].set(w_ihL[l - 1])

    # fc weight padded so the head is a plain lane reduction over the full state.
    w_fc_pad = jnp.zeros((1, L * H), jnp.float32).at[:, (L - 1) * H:].set(w_fc)

    kernel = functools.partial(rnn_wavefront_kernel, num_steps=num_steps)
    vmem = pl.BlockSpec(memory_space=pltpu.MemorySpace.VMEM)
    out_p = pl.pallas_call(
        kernel,
        out_shape=jax.ShapeDtypeStruct((Bp, OUTPUT_DIM), jnp.float32),
        in_specs=[vmem] * 4,
        out_specs=vmem,
    )(drive, w_blk, w_fc_pad, b_fc)
    return out_p[:B]


def init_params(key, input_dim):
    """Deterministic PyTorch-style uniform(-1/sqrt(H), 1/sqrt(H)) init."""
    k = 1.0 / jnp.sqrt(jnp.float32(HIDDEN_DIM))
    keys = jax.random.split(key, 8)
    u = lambda kk, shape: jax.random.uniform(kk, shape, jnp.float32, -k, k)
    w_ih0 = u(keys[0], (input_dim, HIDDEN_DIM))                    # layer 0 W_ih^T
    w_ihL = u(keys[1], (LAYER_DIM - 1, HIDDEN_DIM, HIDDEN_DIM))    # layers 1.. W_ih^T
    w_hh = u(keys[2], (LAYER_DIM, HIDDEN_DIM, HIDDEN_DIM))         # W_hh^T
    b_ih = u(keys[3], (LAYER_DIM, 1, HIDDEN_DIM))
    b_hh = u(keys[4], (LAYER_DIM, 1, HIDDEN_DIM))
    b = b_ih + b_hh                                                # combined bias
    w_fc = u(keys[5], (OUTPUT_DIM, HIDDEN_DIM))                    # fc.weight (out, in)
    b_fc = u(keys[6], (1, OUTPUT_DIM))
    return (w_ih0, w_ihL, w_hh, b, w_fc, b_fc)


def rnn_model_ref(x, params):
    """Pure-JAX reference replicating nn.RNN(batch_first) + Linear semantics."""
    w_ih0, w_ihL, w_hh, b, w_fc, b_fc = params
    B, T, _ = x.shape
    seq = x
    for l in range(LAYER_DIM):
        w_ih = w_ih0 if l == 0 else w_ihL[l - 1]
        h = jnp.zeros((B, HIDDEN_DIM), jnp.float32)
        outs = []
        for t in range(T):
            h = jnp.tanh(seq[:, t, :] @ w_ih + h @ w_hh[l] + b[l])
            outs.append(h)
        seq = jnp.stack(outs, axis=1)
    return seq[:, -1, :] @ w_fc.T + b_fc


if __name__ == "__main__":
    B, T, D = 2, 8, 8  # batch, sequence length, input_dim

    key = jax.random.PRNGKey(0)
    kx, kp = jax.random.split(key)
    x = jax.random.normal(kx, (B, T, D), jnp.float32)
    params = init_params(kp, D)

    out = rnn_model_forward(x, params)
    out = jax.block_until_ready(out)

    ref = rnn_model_ref(x, params)
    assert out.shape == (B, OUTPUT_DIM)
    assert jnp.allclose(out, ref, atol=1e-5, rtol=1e-5), (out, ref)

    print("KERNEL_OK")
</pallas_src>

<mosaic_0001>
module attributes {stable_mosaic.version = 11 : i64} {
  func.func @rnn_wavefront_kernel(%arg0: memref<10x8x192xf32, #tpu.memory_space<vmem>>, %arg1: memref<192x192xf32, #tpu.memory_space<vmem>>, %arg2: memref<1x192xf32, #tpu.memory_space<vmem>>, %arg3: memref<1x1xf32, #tpu.memory_space<vmem>>, %arg4: memref<8x1xf32, #tpu.memory_space<vmem>>) attributes {dimension_semantics = [], scalar_prefetch = 0 : i64, scratch_operands = 0 : i64, tpu.core_type = #tpu.core_type<tc>} {
    %c0 = arith.constant 0 : index
    %c0_0 = arith.constant 0 : index
    %0 = vector.load %arg1[%c0, %c0_0] : memref<192x192xf32, #tpu.memory_space<vmem>>, vector<192x192xf32>
    %c0_1 = arith.constant 0 : index
    %c0_2 = arith.constant 0 : index
    %c0_3 = arith.constant 0 : index
    %1 = vector.load %arg0[%c0_1, %c0_2, %c0_3] : memref<10x8x192xf32, #tpu.memory_space<vmem>>, vector<1x8x192xf32>
    %2 = vector.shape_cast %1 : vector<1x8x192xf32> to vector<8x192xf32>
    %3 = math.tanh %2 : vector<8x192xf32>
    %c1 = arith.constant 1 : index
    %c0_4 = arith.constant 0 : index
    %c0_5 = arith.constant 0 : index
    %4 = vector.load %arg0[%c1, %c0_4, %c0_5] : memref<10x8x192xf32, #tpu.memory_space<vmem>>, vector<1x8x192xf32>
    %5 = vector.shape_cast %4 : vector<1x8x192xf32> to vector<8x192xf32>
    %cst = arith.constant dense<0.000000e+00> : vector<8x192xf32>
    %6 = tpu.matmul %3, %0, %cst {dimension_numbers = #tpu.dot_dimension_numbers<[1], [0], [0], [1], [0, 0, 1, 1], [], []>} : vector<8x192xf32>, vector<192x192xf32>, vector<8x192xf32> -> vector<8x192xf32>
    %7 = arith.addf %5, %6 : vector<8x192xf32>
    %8 = math.tanh %7 : vector<8x192xf32>
    %c2 = arith.constant 2 : index
    %c0_6 = arith.constant 0 : index
    %c0_7 = arith.constant 0 : index
    %9 = vector.load %arg0[%c2, %c0_6, %c0_7] : memref<10x8x192xf32, #tpu.memory_space<vmem>>, vector<1x8x192xf32>
    %10 = vector.shape_cast %9 : vector<1x8x192xf32> to vector<8x192xf32>
    %cst_8 = arith.constant dense<0.000000e+00> : vector<8x192xf32>
    %11 = tpu.matmul %8, %0, %cst_8 {dimension_numbers = #tpu.dot_dimension_numbers<[1], [0], [0], [1], [0, 0, 1, 1], [], []>} : vector<8x192xf32>, vector<192x192xf32>, vector<8x192xf32> -> vector<8x192xf32>
    %12 = arith.addf %10, %11 : vector<8x192xf32>
    %13 = math.tanh %12 : vector<8x192xf32>
    %c3 = arith.constant 3 : index
    %c0_9 = arith.constant 0 : index
    %c0_10 = arith.constant 0 : index
    %14 = vector.load %arg0[%c3, %c0_9, %c0_10] : memref<10x8x192xf32, #tpu.memory_space<vmem>>, vector<1x8x192xf32>
    %15 = vector.shape_cast %14 : vector<1x8x192xf32> to vector<8x192xf32>
    %cst_11 = arith.constant dense<0.000000e+00> : vector<8x192xf32>
    %16 = tpu.matmul %13, %0, %cst_11 {dimension_numbers = #tpu.dot_dimension_numbers<[1], [0], [0], [1], [0, 0, 1, 1], [], []>} : vector<8x192xf32>, vector<192x192xf32>, vector<8x192xf32> -> vector<8x192xf32>
    %17 = arith.addf %15, %16 : vector<8x192xf32>
    %18 = math.tanh %17 : vector<8x192xf32>
    %c4 = arith.constant 4 : index
    %c0_12 = arith.constant 0 : index
    %c0_13 = arith.constant 0 : index
    %19 = vector.load %arg0[%c4, %c0_12, %c0_13] : memref<10x8x192xf32, #tpu.memory_space<vmem>>, vector<1x8x192xf32>
    %20 = vector.shape_cast %19 : vector<1x8x192xf32> to vector<8x192xf32>
    %cst_14 = arith.constant dense<0.000000e+00> : vector<8x192xf32>
    %21 = tpu.matmul %18, %0, %cst_14 {dimension_numbers = #tpu.dot_dimension_numbers<[1], [0], [0], [1], [0, 0, 1, 1], [], []>} : vector<8x192xf32>, vector<192x192xf32>, vector<8x192xf32> -> vector<8x192xf32>
    %22 = arith.addf %20, %21 : vector<8x192xf32>
    %23 = math.tanh %22 : vector<8x192xf32>
    %c5 = arith.constant 5 : index
    %c0_15 = arith.constant 0 : index
    %c0_16 = arith.constant 0 : index
    %24 = vector.load %arg0[%c5, %c0_15, %c0_16] : memref<10x8x192xf32, #tpu.memory_space<vmem>>, vector<1x8x192xf32>
    %25 = vector.shape_cast %24 : vector<1x8x192xf32> to vector<8x192xf32>
    %cst_17 = arith.constant dense<0.000000e+00> : vector<8x192xf32>
    %26 = tpu.matmul %23, %0, %cst_17 {dimension_numbers = #tpu.dot_dimension_numbers<[1], [0], [0], [1], [0, 0, 1, 1], [], []>} : vector<8x192xf32>, vector<192x192xf32>, vector<8x192xf32> -> vector<8x192xf32>
    %27 = arith.addf %25, %26 : vector<8x192xf32>
    %28 = math.tanh %27 : vector<8x192xf32>
    %c6 = arith.constant 6 : index
    %c0_18 = arith.constant 0 : index
    %c0_19 = arith.constant 0 : index
    %29 = vector.load %arg0[%c6, %c0_18, %c0_19] : memref<10x8x192xf32, #tpu.memory_space<vmem>>, vector<1x8x192xf32>
    %30 = vector.shape_cast %29 : vector<1x8x192xf32> to vector<8x192xf32>
    %cst_20 = arith.constant dense<0.000000e+00> : vector<8x192xf32>
    %31 = tpu.matmul %28, %0, %cst_20 {dimension_numbers = #tpu.dot_dimension_numbers<[1], [0], [0], [1], [0, 0, 1, 1], [], []>} : vector<8x192xf32>, vector<192x192xf32>, vector<8x192xf32> -> vector<8x192xf32>
    %32 = arith.addf %30, %31 : vector<8x192xf32>
    %33 = math.tanh %32 : vector<8x192xf32>
    %c7 = arith.constant 7 : index
    %c0_21 = arith.constant 0 : index
    %c0_22 = arith.constant 0 : index
    %34 = vector.load %arg0[%c7, %c0_21, %c0_22] : memref<10x8x192xf32, #tpu.memory_space<vmem>>, vector<1x8x192xf32>
    %35 = vector.shape_cast %34 : vector<1x8x192xf32> to vector<8x192xf32>
    %cst_23 = arith.constant dense<0.000000e+00> : vector<8x192xf32>
    %36 = tpu.matmul %33, %0, %cst_23 {dimension_numbers = #tpu.dot_dimension_numbers<[1], [0], [0], [1], [0, 0, 1, 1], [], []>} : vector<8x192xf32>, vector<192x192xf32>, vector<8x192xf32> -> vector<8x192xf32>
    %37 = arith.addf %35, %36 : vector<8x192xf32>
    %38 = math.tanh %37 : vector<8x192xf32>
    %c8 = arith.constant 8 : index
    %c0_24 = arith.constant 0 : index
    %c0_25 = arith.constant 0 : index
    %39 = vector.load %arg0[%c8, %c0_24, %c0_25] : memref<10x8x192xf32, #tpu.memory_space<vmem>>, vector<1x8x192xf32>
    %40 = vector.shape_cast %39 : vector<1x8x192xf32> to vector<8x192xf32>
    %cst_26 = arith.constant dense<0.000000e+00> : vector<8x192xf32>
    %41 = tpu.matmul %38, %0, %cst_26 {dimension_numbers = #tpu.dot_dimension_numbers<[1], [0], [0], [1], [0, 0, 1, 1], [], []>} : vector<8x192xf32>, vector<192x192xf32>, vector<8x192xf32> -> vector<8x192xf32>
    %42 = arith.addf %40, %41 : vector<8x192xf32>
    %43 = math.tanh %42 : vector<8x192xf32>
    %c9 = arith.constant 9 : index
    %c0_27 = arith.constant 0 : index
    %c0_28 = arith.constant 0 : index
    %44 = vector.load %arg0[%c9, %c0_27, %c0_28] : memref<10x8x192xf32, #tpu.memory_space<vmem>>, vector<1x8x192xf32>
    %45 = vector.shape_cast %44 : vector<1x8x192xf32> to vector<8x192xf32>
    %cst_29 = arith.constant dense<0.000000e+00> : vector<8x192xf32>
    %46 = tpu.matmul %43, %0, %cst_29 {dimension_numbers = #tpu.dot_dimension_numbers<[1], [0], [0], [1], [0, 0, 1, 1], [], []>} : vector<8x192xf32>, vector<192x192xf32>, vector<8x192xf32> -> vector<8x192xf32>
    %47 = arith.addf %45, %46 : vector<8x192xf32>
    %48 = math.tanh %47 : vector<8x192xf32>
    %c0_30 = arith.constant 0 : index
    %c0_31 = arith.constant 0 : index
    %49 = vector.load %arg2[%c0_30, %c0_31] : memref<1x192xf32, #tpu.memory_space<vmem>>, vector<1x192xf32>
    %50 = vector.broadcast %49 : vector<1x192xf32> to vector<8x192xf32>
    %51 = arith.mulf %48, %50 : vector<8x192xf32>
    %cst_32 = arith.constant dense<0.000000e+00> : vector<8xf32>
    %52 = vector.multi_reduction <add>, %51, %cst_32 [1] : vector<8x192xf32> to vector<8xf32>
    %53 = vector.shape_cast %52 : vector<8xf32> to vector<8x1xf32>
    %c0_33 = arith.constant 0 : index
    %c0_34 = arith.constant 0 : index
    %54 = vector.load %arg3[%c0_33, %c0_34] : memref<1x1xf32, #tpu.memory_space<vmem>>, vector<1x1xf32>
    %55 = vector.broadcast %54 : vector<1x1xf32> to vector<8x1xf32>
    %56 = arith.addf %53, %55 : vector<8x1xf32>
    %c0_35 = arith.constant 0 : index
    %c0_36 = arith.constant 0 : index
    %57 = vector.load %arg4[%c0_35, %c0_36] : memref<8x1xf32, #tpu.memory_space<vmem>>, vector<8x1xf32>
    tpu.vector_store %arg4[%c0_35, %c0_36], %56 {strides = array<i32>} : memref<8x1xf32, #tpu.memory_space<vmem>>, vector<8x1xf32>,
    return
  }
}

</mosaic_0001>

<llo_original>
// kernel: rnn_model_forward.1
$region0: #{rnn_model_forward.1}
  #allocation0 [shape = 'u32[]', space=smem, size = 0x4, offset = 0x4, fixed_abs, tag = 'smem constant byte address 0x4 - core index']
  #allocation1 [shape = 'u32[144,128]{1,0:T(1,128)}', space=vmem, size = 0x12000, scoped, tag = 'internal scratch']
  #allocation2 [shape = 'f32[1,1]{1,0:T(1,128)S(1)}', space=vmem, size = 0x200, scoped, tag = 'scoped memory for rnn_model_forward.1']
  %s0 = inlined_call_operand.vmem [shape: f32[10,8,192], index: 0, kind: input, shape index: {}]
  %s1 = inlined_call_operand.vmem [shape: f32[192,192], index: 1, kind: input, shape index: {}]
  %s2 = inlined_call_operand.vmem [shape: f32[1,192], index: 2, kind: input, shape index: {}]
  %s3 = inlined_call_operand.<no memory space> [shape: f32[1,1], index: 3, kind: input, shape index: {}]
  %s4 = inlined_call_operand.vmem [shape: f32[8,1], index: 4, kind: output, shape index: {}]
  %s5 = sld [smem:[#allocation0]]
  $region26: #{rnn_model_forward.1} parent=0
    _
  %s7 = ssub.s32 1, %s5
  %s8 = scalar_select 0, %s7, %s5
  %v9 = vstv %s3
  %10 = vst [vmem:[#allocation2] sm:$0x1] %v9
  // Predicated region
  $region2: #{rnn_model_forward.1} parent=0 // pred_check
    _
  $region3: #{rnn_model_forward.1} parent=0 // pred_check_branch
    %12 = sbr.rel (0) target = $region5
  $region4: #{rnn_model_forward.1} parent=0 // pred_region
    _
  $region5: #{rnn_model_forward.1} parent=0 // pred_fallthru
    _
  // Predicated region
  $region6: #{rnn_model_forward.1} parent=0 // pred_check
    _
  $region7: #{rnn_model_forward.1} parent=0 // pred_check_branch
    %14 = sbr.rel (0) target = $region9
  $region8: #{rnn_model_forward.1} parent=0 // pred_region
    _
  $region9: #{rnn_model_forward.1} parent=0 // pred_fallthru
    _
  // Predicated region
  $region10: #{rnn_model_forward.1} parent=0 // pred_check
    _
  $region11: #{rnn_model_forward.1} parent=0 // pred_check_branch
    %16 = sbr.rel (0) target = $region13
  $region12: #{rnn_model_forward.1} parent=0 // pred_region
    _
  $region13: #{rnn_model_forward.1} parent=0 // pred_fallthru
    _
  // Predicated region
  $region14: #{rnn_model_forward.1} parent=0 // pred_check
    _
  $region15: #{rnn_model_forward.1} parent=0 // pred_check_branch
    %18 = sbr.rel (0) target = $region17
  $region16: #{rnn_model_forward.1} parent=0 // pred_region
    _
  $region17: #{rnn_model_forward.1} parent=0 // pred_fallthru
    _
  %v19 = vld [vmem:[%s1] sm:$0xff]
  %v20 = vld [vmem:[%s1 + $0x8] sm:$0xff]
  %v21 = vld [vmem:[%s1 + $0x10] sm:$0xff]
  %v22 = vld [vmem:[%s1 + $0x18] sm:$0xff]
  %v23 = vld [vmem:[%s1 + $0x20] sm:$0xff]
  %v24 = vld [vmem:[%s1 + $0x28] sm:$0xff]
  %v25 = vld [vmem:[%s1 + $0x30] sm:$0xff]
  %v26 = vld [vmem:[%s1 + $0x38] sm:$0xff]
  %v27 = vld [vmem:[%s1 + $0x40] sm:$0xff]
  %v28 = vld [vmem:[%s1 + $0x48] sm:$0xff]
  %v29 = vld [vmem:[%s1 + $0x50] sm:$0xff]
  %v30 = vld [vmem:[%s1 + $0x58] sm:$0xff]
  %v31 = vld [vmem:[%s1 + $0x60] sm:$0xff]
  %v32 = vld [vmem:[%s1 + $0x68] sm:$0xff]
  %v33 = vld [vmem:[%s1 + $0x70] sm:$0xff]
  %v34 = vld [vmem:[%s1 + $0x78] sm:$0xff]
  %v35 = vld [vmem:[%s1 + $0x80] sm:$0xff]
  %v36 = vld [vmem:[%s1 + $0x88] sm:$0xff]
  %v37 = vld [vmem:[%s1 + $0x90] sm:$0xff]
  %v38 = vld [vmem:[%s1 + $0x98] sm:$0xff]
  %v39 = vld [vmem:[%s1 + $0xa0] sm:$0xff]
  %v40 = vld [vmem:[%s1 + $0xa8] sm:$0xff]
  %v41 = vld [vmem:[%s1 + $0xb0] sm:$0xff]
  %v42 = vld [vmem:[%s1 + $0xb8] sm:$0xff]
  %v43 = vld [vmem:[%s1 + $0xc0] sm:$0xff]
  %v44 = vld [vmem:[%s1 + $0xc8] sm:$0xff]
  %v45 = vld [vmem:[%s1 + $0xd0] sm:$0xff]
  %v46 = vld [vmem:[%s1 + $0xd8] sm:$0xff]
  %v47 = vld [vmem:[%s1 + $0xe0] sm:$0xff]
  %v48 = vld [vmem:[%s1 + $0xe8] sm:$0xff]
  %v49 = vld [vmem:[%s1 + $0xf0] sm:$0xff]
  %v50 = vld [vmem:[%s1 + $0xf8] sm:$0xff]
  %v51 = vld [vmem:[%s1 + $0x100] sm:$0xff]
  %v52 = vld [vmem:[%s1 + $0x108] sm:$0xff]
  %v53 = vld [vmem:[%s1 + $0x110] sm:$0xff]
  %v54 = vld [vmem:[%s1 + $0x118] sm:$0xff]
  %v55 = vld [vmem:[%s1 + $0x120] sm:$0xff]
  %v56 = vld [vmem:[%s1 + $0x128] sm:$0xff]
  %v57 = vld [vmem:[%s1 + $0x130] sm:$0xff]
  %v58 = vld [vmem:[%s1 + $0x138] sm:$0xff]
  %v59 = vld [vmem:[%s1 + $0x140] sm:$0xff]
  %v60 = vld [vmem:[%s1 + $0x148] sm:$0xff]
  %v61 = vld [vmem:[%s1 + $0x150] sm:$0xff]
  %v62 = vld [vmem:[%s1 + $0x158] sm:$0xff]
  %v63 = vld [vmem:[%s1 + $0x160] sm:$0xff]
  %v64 = vld [vmem:[%s1 + $0x168] sm:$0xff]
  %v65 = vld [vmem:[%s1 + $0x170] sm:$0xff]
  %v66 = vld [vmem:[%s1 + $0x178] sm:$0xff]
  %v67 = vld [vmem:[%s0] sm:$0xff]
  %v68 = vld [vmem:[%s0 + $0x8] sm:$0xff]
  %v69 = vtanh.pop %v67
  %v70 = vtanh.pop %v68
  %s71 = scalar_lea.vmem %s0, 16
  %v72 = vld [vmem:[%s71] sm:$0xff]
  %v73 = vld [vmem:[%s71 + $0x8] sm:$0xff]
  %vm74 = vcmask 523264
  %v76 = vsel %vm74, %v70, 0
  %78 = vmatprep.subr.mxu0 %v20
  %79 = vmatpush1.msra.mxu0 %v19
  %80 = vmatprep.subr.mxu0 %v22
  %81 = vmatpush1.msra.mxu0 %v21
  %82 = vmatprep.subr.mxu0 %v24
  %83 = vmatpush1.msra.mxu0 %v23
  %84 = vmatprep.subr.mxu0 %v26
  %85 = vmatpush1.msra.mxu0 %v25
  %86 = vmatprep.subr.mxu0 %v28
  %87 = vmatpush1.msra.mxu0 %v27
  %88 = vmatprep.subr.mxu0 %v30
  %89 = vmatpush1.msra.mxu0 %v29
  %90 = vmatprep.subr.mxu0 %v32
  %91 = vmatpush1.msra.mxu0 %v31
  %92 = vmatprep.subr.mxu0 %v34
  %93 = vmatpush1.msra.mxu0 %v33
  %94 = vmatprep.subr.mxu0 %v36
  %95 = vmatpush1.msra.mxu0 %v35
  %96 = vmatprep.subr.mxu0 %v38
  %97 = vmatpush1.msra.mxu0 %v37
  %98 = vmatprep.subr.mxu0 %v40
  %99 = vmatpush1.msra.mxu0 %v39
  %100 = vmatprep.subr.mxu0 %v42
  %101 = vmatpush1.msra.mxu0 %v41
  %102 = vmatprep.subr.mxu0 %v44
  %103 = vmatpush1.msra.mxu0 %v43
  %104 = vmatprep.subr.mxu0 %v46
  %105 = vmatpush1.msra.mxu0 %v45
  %106 = vmatprep.subr.mxu0 %v48
  %107 = vmatpush1.msra.mxu0 %v47
  %108 = vmatprep.subr.mxu0 %v50
  %109 = vmatpush1.msra.mxu0 %v49
  %110 = vmatprep.subr.mxu0 %v52
  %111 = vmatpush1.msra.mxu0 %v51
  %112 = vmatprep.subr.mxu0 %v54
  %113 = vmatpush1.msra.mxu0 %v53
  %114 = vmatprep.subr.mxu0 %v56
  %115 = vmatpush1.msra.mxu0 %v55
  %116 = vmatprep.subr.mxu0 %v58
  %117 = vmatpush1.msra.mxu0 %v57
  %118 = vmatprep.subr.mxu0 %v60
  %119 = vmatpush1.msra.mxu0 %v59
  %120 = vmatprep.subr.mxu0 %v62
  %121 = vmatpush1.msra.mxu0 %v61
  %122 = vmatprep.subr.mxu0 %v64
  %123 = vmatpush1.msra.mxu0 %v63
  %124 = vmatprep.subr.mxu0 %v66
  %125 = vmatpush1.msra.mxu0 %v65
  %126 = vmatprep.subr.mxu0 0.0
  %127 = vmatpush1.msra.mxu0 0.0
  %128 = vmatprep.subr.mxu0 0.0
  %129 = vmatpush1.msra.mxu0 0.0
  %130 = vmatprep.subr.mxu0 0.0
  %131 = vmatpush1.msra.mxu0 0.0
  %132 = vmatprep.subr.mxu0 0.0
  %133 = vmatpush1.msra.mxu0 0.0
  %134 = vmatprep.subr.mxu0 0.0
  %135 = vmatpush1.msra.mxu0 0.0
  %136 = vmatprep.subr.mxu0 0.0
  %137 = vmatpush1.msra.mxu0 0.0
  %138 = vmatprep.subr.mxu0 0.0
  %139 = vmatpush1.msra.mxu0 0.0
  %140 = vmatprep.subr.mxu0 0.0
  %141 = vmatpush1.msra.mxu0 0.0
  %142 = vmatprep.mubr.f32.mxu0 %v76
  %143 = vmatmul.mubr.f32.gmra.mrb[0].mxu0 %v69
  %v144 = vpop.f32.mrb[0].mxu0
  %v145 = vadd.f32 0.0, %v144
  %v146 = vpop.f32.mrb[0].mxu0
  %v147 = vadd.f32 0.0, %v146
  %148 = vdwg.mxu0
  %v149 = vadd.f32 %v72, %v145
  %v150 = vadd.f32 %v73, %v147
  %v151 = vtanh.pop %v149
  %v152 = vtanh.pop %v150
  %s153 = scalar_lea.vmem %s0, 32
  %v154 = vld [vmem:[%s153] sm:$0xff]
  %v155 = vld [vmem:[%s153 + $0x8] sm:$0xff]
  %v157 = vsel %vm74, %v152, 0
  %159 = vmatprep.subr.mxu0 %v20
  %160 = vmatpush1.msra.mxu0 %v19
  %161 = vmatprep.subr.mxu0 %v22
  %162 = vmatpush1.msra.mxu0 %v21
  %163 = vmatprep.subr.mxu0 %v24
  %164 = vmatpush1.msra.mxu0 %v23
  %165 = vmatprep.subr.mxu0 %v26
  %166 = vmatpush1.msra.mxu0 %v25
  %167 = vmatprep.subr.mxu0 %v28
  %168 = vmatpush1.msra.mxu0 %v27
  %169 = vmatprep.subr.mxu0 %v30
  %170 = vmatpush1.msra.mxu0 %v29
  %171 = vmatprep.subr.mxu0 %v32
  %172 = vmatpush1.msra.mxu0 %v31
  %173 = vmatprep.subr.mxu0 %v34
  %174 = vmatpush1.msra.mxu0 %v33
  %175 = vmatprep.subr.mxu0 %v36
  %176 = vmatpush1.msra.mxu0 %v35
  %177 = vmatprep.subr.mxu0 %v38
  %178 = vmatpush1.msra.mxu0 %v37
  %179 = vmatprep.subr.mxu0 %v40
  %180 = vmatpush1.msra.mxu0 %v39
  %181 = vmatprep.subr.mxu0 %v42
  %182 = vmatpush1.msra.mxu0 %v41
  %183 = vmatprep.subr.mxu0 %v44
  %184 = vmatpush1.msra.mxu0 %v43
  %185 = vmatprep.subr.mxu0 %v46
  %186 = vmatpush1.msra.mxu0 %v45
  %187 = vmatprep.subr.mxu0 %v48
  %188 = vmatpush1.msra.mxu0 %v47
  %189 = vmatprep.subr.mxu0 %v50
  %190 = vmatpush1.msra.mxu0 %v49
  %191 = vmatprep.subr.mxu0 %v52
  %192 = vmatpush1.msra.mxu0 %v51
  %193 = vmatprep.subr.mxu0 %v54
  %194 = vmatpush1.msra.mxu0 %v53
  %195 = vmatprep.subr.mxu0 %v56
  %196 = vmatpush1.msra.mxu0 %v55
  %197 = vmatprep.subr.mxu0 %v58
  %198 = vmatpush1.msra.mxu0 %v57
  %199 = vmatprep.subr.mxu0 %v60
  %200 = vmatpush1.msra.mxu0 %v59
  %201 = vmatprep.subr.mxu0 %v62
  %202 = vmatpush1.msra.mxu0 %v61
  %203 = vmatprep.subr.mxu0 %v64
  %204 = vmatpush1.msra.mxu0 %v63
  %205 = vmatprep.subr.mxu0 %v66
  %206 = vmatpush1.msra.mxu0 %v65
  %207 = vmatprep.subr.mxu0 0.0
  %208 = vmatpush1.msra.mxu0 0.0
  %209 = vmatprep.subr.mxu0 0.0
  %210 = vmatpush1.msra.mxu0 0.0
  %211 = vmatprep.subr.mxu0 0.0
  %212 = vmatpush1.msra.mxu0 0.0
  %213 = vmatprep.subr.mxu0 0.0
  %214 = vmatpush1.msra.mxu0 0.0
  %215 = vmatprep.subr.mxu0 0.0
  %216 = vmatpush1.msra.mxu0 0.0
  %217 = vmatprep.subr.mxu0 0.0
  %218 = vmatpush1.msra.mxu0 0.0
  %219 = vmatprep.subr.mxu0 0.0
  %220 = vmatpush1.msra.mxu0 0.0
  %221 = vmatprep.subr.mxu0 0.0
  %222 = vmatpush1.msra.mxu0 0.0
  %223 = vmatprep.mubr.f32.mxu0 %v157
  %224 = vmatmul.mubr.f32.gmra.mrb[0].mxu0 %v151
  %v225 = vpop.f32.mrb[0].mxu0
  %v226 = vadd.f32 0.0, %v225
  %v227 = vpop.f32.mrb[0].mxu0
  %v228 = vadd.f32 0.0, %v227
  %229 = vdwg.mxu0
  %v230 = vadd.f32 %v154, %v226
  %v231 = vadd.f32 %v155, %v228
  %v232 = vtanh.pop %v230
  %v233 = vtanh.pop %v231
  %s234 = scalar_lea.vmem %s0, 48
  %v235 = vld [vmem:[%s234] sm:$0xff]
  %v236 = vld [vmem:[%s234 + $0x8] sm:$0xff]
  %v238 = vsel %vm74, %v233, 0
  %240 = vmatprep.subr.mxu0 %v20
  %241 = vmatpush1.msra.mxu0 %v19
  %242 = vmatprep.subr.mxu0 %v22
  %243 = vmatpush1.msra.mxu0 %v21
  %244 = vmatprep.subr.mxu0 %v24
  %245 = vmatpush1.msra.mxu0 %v23
  %246 = vmatprep.subr.mxu0 %v26
  %247 = vmatpush1.msra.mxu0 %v25
  %248 = vmatprep.subr.mxu0 %v28
  %249 = vmatpush1.msra.mxu0 %v27
  %250 = vmatprep.subr.mxu0 %v30
  %251 = vmatpush1.msra.mxu0 %v29
  %252 = vmatprep.subr.mxu0 %v32
  %253 = vmatpush1.msra.mxu0 %v31
  %254 = vmatprep.subr.mxu0 %v34
  %255 = vmatpush1.msra.mxu0 %v33
  %256 = vmatprep.subr.mxu0 %v36
  %257 = vmatpush1.msra.mxu0 %v35
  %258 = vmatprep.subr.mxu0 %v38
  %259 = vmatpush1.msra.mxu0 %v37
  %260 = vmatprep.subr.mxu0 %v40
  %261 = vmatpush1.msra.mxu0 %v39
  %262 = vmatprep.subr.mxu0 %v42
  %263 = vmatpush1.msra.mxu0 %v41
  %264 = vmatprep.subr.mxu0 %v44
  %265 = vmatpush1.msra.mxu0 %v43
  %266 = vmatprep.subr.mxu0 %v46
  %267 = vmatpush1.msra.mxu0 %v45
  %268 = vmatprep.subr.mxu0 %v48
  %269 = vmatpush1.msra.mxu0 %v47
  %270 = vmatprep.subr.mxu0 %v50
  %271 = vmatpush1.msra.mxu0 %v49
  %272 = vmatprep.subr.mxu0 %v52
  %273 = vmatpush1.msra.mxu0 %v51
  %274 = vmatprep.subr.mxu0 %v54
  %275 = vmatpush1.msra.mxu0 %v53
  %276 = vmatprep.subr.mxu0 %v56
  %277 = vmatpush1.msra.mxu0 %v55
  %278 = vmatprep.subr.mxu0 %v58
  %279 = vmatpush1.msra.mxu0 %v57
  %280 = vmatprep.subr.mxu0 %v60
  %281 = vmatpush1.msra.mxu0 %v59
  %282 = vmatprep.subr.mxu0 %v62
  %283 = vmatpush1.msra.mxu0 %v61
  %284 = vmatprep.subr.mxu0 %v64
  %285 = vmatpush1.msra.mxu0 %v63
  %286 = vmatprep.subr.mxu0 %v66
  %287 = vmatpush1.msra.mxu0 %v65
  %288 = vmatprep.subr.mxu0 0.0
  %289 = vmatpush1.msra.mxu0 0.0
  %290 = vmatprep.subr.mxu0 0.0
  %291 = vmatpush1.msra.mxu0 0.0
  %292 = vmatprep.subr.mxu0 0.0
  %293 = vmatpush1.msra.mxu0 0.0
  %294 = vmatprep.subr.mxu0 0.0
  %295 = vmatpush1.msra.mxu0 0.0
  %296 = vmatprep.subr.mxu0 0.0
  %297 = vmatpush1.msra.mxu0 0.0
  %298 = vmatprep.subr.mxu0 0.0
  %299 = vmatpush1.msra.mxu0 0.0
  %300 = vmatprep.subr.mxu0 0.0
  %301 = vmatpush1.msra.mxu0 0.0
  %302 = vmatprep.subr.mxu0 0.0
  %303 = vmatpush1.msra.mxu0 0.0
  %304 = vmatprep.mubr.f32.mxu0 %v238
  %305 = vmatmul.mubr.f32.gmra.mrb[0].mxu0 %v232
  %v306 = vpop.f32.mrb[0].mxu0
  %v307 = vadd.f32 0.0, %v306
  %v308 = vpop.f32.mrb[0].mxu0
  %v309 = vadd.f32 0.0, %v308
  %310 = vdwg.mxu0
  %v311 = vadd.f32 %v235, %v307
  %v312 = vadd.f32 %v236, %v309
  %v313 = vtanh.pop %v311
  %v314 = vtanh.pop %v312
  %s315 = scalar_lea.vmem %s0, 64
  %v316 = vld [vmem:[%s315] sm:$0xff]
  %v317 = vld [vmem:[%s315 + $0x8] sm:$0xff]
  %v319 = vsel %vm74, %v314, 0
  %321 = vmatprep.subr.mxu0 %v20
  %322 = vmatpush1.msra.mxu0 %v19
  %323 = vmatprep.subr.mxu0 %v22
  %324 = vmatpush1.msra.mxu0 %v21
  %325 = vmatprep.subr.mxu0 %v24
  %326 = vmatpush1.msra.mxu0 %v23
  %327 = vmatprep.subr.mxu0 %v26
  %328 = vmatpush1.msra.mxu0 %v25
  %329 = vmatprep.subr.mxu0 %v28
  %330 = vmatpush1.msra.mxu0 %v27
  %331 = vmatprep.subr.mxu0 %v30
  %332 = vmatpush1.msra.mxu0 %v29
  %333 = vmatprep.subr.mxu0 %v32
  %334 = vmatpush1.msra.mxu0 %v31
  %335 = vmatprep.subr.mxu0 %v34
  %336 = vmatpush1.msra.mxu0 %v33
  %337 = vmatprep.subr.mxu0 %v36
  %338 = vmatpush1.msra.mxu0 %v35
  %339 = vmatprep.subr.mxu0 %v38
  %340 = vmatpush1.msra.mxu0 %v37
  %341 = vmatprep.subr.mxu0 %v40
  %342 = vmatpush1.msra.mxu0 %v39
  %343 = vmatprep.subr.mxu0 %v42
  %344 = vmatpush1.msra.mxu0 %v41
  %345 = vmatprep.subr.mxu0 %v44
  %346 = vmatpush1.msra.mxu0 %v43
  %347 = vmatprep.subr.mxu0 %v46
  %348 = vmatpush1.msra.mxu0 %v45
  %349 = vmatprep.subr.mxu0 %v48
  %350 = vmatpush1.msra.mxu0 %v47
  %351 = vmatprep.subr.mxu0 %v50
  %352 = vmatpush1.msra.mxu0 %v49
  %353 = vmatprep.subr.mxu0 %v52
  %354 = vmatpush1.msra.mxu0 %v51
  %355 = vmatprep.subr.mxu0 %v54
  %356 = vmatpush1.msra.mxu0 %v53
  %357 = vmatprep.subr.mxu0 %v56
  %358 = vmatpush1.msra.mxu0 %v55
  %359 = vmatprep.subr.mxu0 %v58
  %360 = vmatpush1.msra.mxu0 %v57
  %361 = vmatprep.subr.mxu0 %v60
  %362 = vmatpush1.msra.mxu0 %v59
  %363 = vmatprep.subr.mxu0 %v62
  %364 = vmatpush1.msra.mxu0 %v61
  %365 = vmatprep.subr.mxu0 %v64
  %366 = vmatpush1.msra.mxu0 %v63
  %367 = vmatprep.subr.mxu0 %v66
  %368 = vmatpush1.msra.mxu0 %v65
  %369 = vmatprep.subr.mxu0 0.0
  %370 = vmatpush1.msra.mxu0 0.0
  %371 = vmatprep.subr.mxu0 0.0
  %372 = vmatpush1.msra.mxu0 0.0
  %373 = vmatprep.subr.mxu0 0.0
  %374 = vmatpush1.msra.mxu0 0.0
  %375 = vmatprep.subr.mxu0 0.0
  %376 = vmatpush1.msra.mxu0 0.0
  %377 = vmatprep.subr.mxu0 0.0
  %378 = vmatpush1.msra.mxu0 0.0
  %379 = vmatprep.subr.mxu0 0.0
  %380 = vmatpush1.msra.mxu0 0.0
  %381 = vmatprep.subr.mxu0 0.0
  %382 = vmatpush1.msra.mxu0 0.0
  %383 = vmatprep.subr.mxu0 0.0
  %384 = vmatpush1.msra.mxu0 0.0
  %385 = vmatprep.mubr.f32.mxu0 %v319
  %386 = vmatmul.mubr.f32.gmra.mrb[0].mxu0 %v313
  %v387 = vpop.f32.mrb[0].mxu0
  %v388 = vadd.f32 0.0, %v387
  %v389 = vpop.f32.mrb[0].mxu0
  %v390 = vadd.f32 0.0, %v389
  %391 = vdwg.mxu0
  %v392 = vadd.f32 %v316, %v388
  %v393 = vadd.f32 %v317, %v390
  %v394 = vtanh.pop %v392
  %v395 = vtanh.pop %v393
  %s396 = scalar_lea.vmem %s0, 80
  %v397 = vld [vmem:[%s396] sm:$0xff]
  %v398 = vld [vmem:[%s396 + $0x8] sm:$0xff]
  %v400 = vsel %vm74, %v395, 0
  %402 = vmatprep.subr.mxu0 %v20
  %403 = vmatpush1.msra.mxu0 %v19
  %404 = vmatprep.subr.mxu0 %v22
  %405 = vmatpush1.msra.mxu0 %v21
  %406 = vmatprep.subr.mxu0 %v24
  %407 = vmatpush1.msra.mxu0 %v23
  %408 = vmatprep.subr.mxu0 %v26
  %409 = vmatpush1.msra.mxu0 %v25
  %410 = vmatprep.subr.mxu0 %v28
  %411 = vmatpush1.msra.mxu0 %v27
  %412 = vmatprep.subr.mxu0 %v30
  %413 = vmatpush1.msra.mxu0 %v29
  %414 = vmatprep.subr.mxu0 %v32
  %415 = vmatpush1.msra.mxu0 %v31
  %416 = vmatprep.subr.mxu0 %v34
  %417 = vmatpush1.msra.mxu0 %v33
  %418 = vmatprep.subr.mxu0 %v36
  %419 = vmatpush1.msra.mxu0 %v35
  %420 = vmatprep.subr.mxu0 %v38
  %421 = vmatpush1.msra.mxu0 %v37
  %422 = vmatprep.subr.mxu0 %v40
  %423 = vmatpush1.msra.mxu0 %v39
  %424 = vmatprep.subr.mxu0 %v42
  %425 = vmatpush1.msra.mxu0 %v41
  %426 = vmatprep.subr.mxu0 %v44
  %427 = vmatpush1.msra.mxu0 %v43
  %428 = vmatprep.subr.mxu0 %v46
  %429 = vmatpush1.msra.mxu0 %v45
  %430 = vmatprep.subr.mxu0 %v48
  %431 = vmatpush1.msra.mxu0 %v47
  %432 = vmatprep.subr.mxu0 %v50
  %433 = vmatpush1.msra.mxu0 %v49
  %434 = vmatprep.subr.mxu0 %v52
  %435 = vmatpush1.msra.mxu0 %v51
  %436 = vmatprep.subr.mxu0 %v54
  %437 = vmatpush1.msra.mxu0 %v53
  %438 = vmatprep.subr.mxu0 %v56
  %439 = vmatpush1.msra.mxu0 %v55
  %440 = vmatprep.subr.mxu0 %v58
  %441 = vmatpush1.msra.mxu0 %v57
  %442 = vmatprep.subr.mxu0 %v60
  %443 = vmatpush1.msra.mxu0 %v59
  %444 = vmatprep.subr.mxu0 %v62
  %445 = vmatpush1.msra.mxu0 %v61
  %446 = vmatprep.subr.mxu0 %v64
  %447 = vmatpush1.msra.mxu0 %v63
  %448 = vmatprep.subr.mxu0 %v66
  %449 = vmatpush1.msra.mxu0 %v65
  %450 = vmatprep.subr.mxu0 0.0
  %451 = vmatpush1.msra.mxu0 0.0
  %452 = vmatprep.subr.mxu0 0.0
  %453 = vmatpush1.msra.mxu0 0.0
  %454 = vmatprep.subr.mxu0 0.0
  %455 = vmatpush1.msra.mxu0 0.0
  %456 = vmatprep.subr.mxu0 0.0
  %457 = vmatpush1.msra.mxu0 0.0
  %458 = vmatprep.subr.mxu0 0.0
  %459 = vmatpush1.msra.mxu0 0.0
  %460 = vmatprep.subr.mxu0 0.0
  %461 = vmatpush1.msra.mxu0 0.0
  %462 = vmatprep.subr.mxu0 0.0
  %463 = vmatpush1.msra.mxu0 0.0
  %464 = vmatprep.subr.mxu0 0.0
  %465 = vmatpush1.msra.mxu0 0.0
  %466 = vmatprep.mubr.f32.mxu0 %v400
  %467 = vmatmul.mubr.f32.gmra.mrb[0].mxu0 %v394
  %v468 = vpop.f32.mrb[0].mxu0
  %v469 = vadd.f32 0.0, %v468
  %v470 = vpop.f32.mrb[0].mxu0
  %v471 = vadd.f32 0.0, %v470
  %472 = vdwg.mxu0
  %v473 = vadd.f32 %v397, %v469
  %v474 = vadd.f32 %v398, %v471
  %v475 = vtanh.pop %v473
  %v476 = vtanh.pop %v474
  %s477 = scalar_lea.vmem %s0, 96
  %v478 = vld [vmem:[%s477] sm:$0xff]
  %v479 = vld [vmem:[%s477 + $0x8] sm:$0xff]
  %v481 = vsel %vm74, %v476, 0
  %483 = vmatprep.subr.mxu0 %v20
  %484 = vmatpush1.msra.mxu0 %v19
  %485 = vmatprep.subr.mxu0 %v22
  %486 = vmatpush1.msra.mxu0 %v21
  %487 = vmatprep.subr.mxu0 %v24
  %488 = vmatpush1.msra.mxu0 %v23
  %489 = vmatprep.subr.mxu0 %v26
  %490 = vmatpush1.msra.mxu0 %v25
  %491 = vmatprep.subr.mxu0 %v28
  %492 = vmatpush1.msra.mxu0 %v27
  %493 = vmatprep.subr.mxu0 %v30
  %494 = vmatpush1.msra.mxu0 %v29
  %495 = vmatprep.subr.mxu0 %v32
  %496 = vmatpush1.msra.mxu0 %v31
  %497 = vmatprep.subr.mxu0 %v34
  %498 = vmatpush1.msra.mxu0 %v33
  %499 = vmatprep.subr.mxu0 %v36
  %500 = vmatpush1.msra.mxu0 %v35
  %501 = vmatprep.subr.mxu0 %v38
  %502 = vmatpush1.msra.mxu0 %v37
  %503 = vmatprep.subr.mxu0 %v40
  %504 = vmatpush1.msra.mxu0 %v39
  %505 = vmatprep.subr.mxu0 %v42
  %506 = vmatpush1.msra.mxu0 %v41
  %507 = vmatprep.subr.mxu0 %v44
  %508 = vmatpush1.msra.mxu0 %v43
  %509 = vmatprep.subr.mxu0 %v46
  %510 = vmatpush1.msra.mxu0 %v45
  %511 = vmatprep.subr.mxu0 %v48
  %512 = vmatpush1.msra.mxu0 %v47
  %513 = vmatprep.subr.mxu0 %v50
  %514 = vmatpush1.msra.mxu0 %v49
  %515 = vmatprep.subr.mxu0 %v52
  %516 = vmatpush1.msra.mxu0 %v51
  %517 = vmatprep.subr.mxu0 %v54
  %518 = vmatpush1.msra.mxu0 %v53
  %519 = vmatprep.subr.mxu0 %v56
  %520 = vmatpush1.msra.mxu0 %v55
  %521 = vmatprep.subr.mxu0 %v58
  %522 = vmatpush1.msra.mxu0 %v57
  %523 = vmatprep.subr.mxu0 %v60
  %524 = vmatpush1.msra.mxu0 %v59
  %525 = vmatprep.subr.mxu0 %v62
  %526 = vmatpush1.msra.mxu0 %v61
  %527 = vmatprep.subr.mxu0 %v64
  %528 = vmatpush1.msra.mxu0 %v63
  %529 = vmatprep.subr.mxu0 %v66
  %530 = vmatpush1.msra.mxu0 %v65
  %531 = vmatprep.subr.mxu0 0.0
  %532 = vmatpush1.msra.mxu0 0.0
  %533 = vmatprep.subr.mxu0 0.0
  %534 = vmatpush1.msra.mxu0 0.0
  %535 = vmatprep.subr.mxu0 0.0
  %536 = vmatpush1.msra.mxu0 0.0
  %537 = vmatprep.subr.mxu0 0.0
  %538 = vmatpush1.msra.mxu0 0.0
  %539 = vmatprep.subr.mxu0 0.0
  %540 = vmatpush1.msra.mxu0 0.0
  %541 = vmatprep.subr.mxu0 0.0
  %542 = vmatpush1.msra.mxu0 0.0
  %543 = vmatprep.subr.mxu0 0.0
  %544 = vmatpush1.msra.mxu0 0.0
  %545 = vmatprep.subr.mxu0 0.0
  %546 = vmatpush1.msra.mxu0 0.0
  %547 = vmatprep.mubr.f32.mxu0 %v481
  %548 = vmatmul.mubr.f32.gmra.mrb[0].mxu0 %v475
  %v549 = vpop.f32.mrb[0].mxu0
  %v550 = vadd.f32 0.0, %v549
  %v551 = vpop.f32.mrb[0].mxu0
  %v552 = vadd.f32 0.0, %v551
  %553 = vdwg.mxu0
  %v554 = vadd.f32 %v478, %v550
  %v555 = vadd.f32 %v479, %v552
  %v556 = vtanh.pop %v554
  %v557 = vtanh.pop %v555
  %s558 = scalar_lea.vmem %s0, 112
  %v559 = vld [vmem:[%s558] sm:$0xff]
  %v560 = vld [vmem:[%s558 + $0x8] sm:$0xff]
  %v562 = vsel %vm74, %v557, 0
  %564 = vmatprep.subr.mxu0 %v20
  %565 = vmatpush1.msra.mxu0 %v19
  %566 = vmatprep.subr.mxu0 %v22
  %567 = vmatpush1.msra.mxu0 %v21
  %568 = vmatprep.subr.mxu0 %v24
  %569 = vmatpush1.msra.mxu0 %v23
  %570 = vmatprep.subr.mxu0 %v26
  %571 = vmatpush1.msra.mxu0 %v25
  %572 = vmatprep.subr.mxu0 %v28
  %573 = vmatpush1.msra.mxu0 %v27
  %574 = vmatprep.subr.mxu0 %v30
  %575 = vmatpush1.msra.mxu0 %v29
  %576 = vmatprep.subr.mxu0 %v32
  %577 = vmatpush1.msra.mxu0 %v31
  %578 = vmatprep.subr.mxu0 %v34
  %579 = vmatpush1.msra.mxu0 %v33
  %580 = vmatprep.subr.mxu0 %v36
  %581 = vmatpush1.msra.mxu0 %v35
  %582 = vmatprep.subr.mxu0 %v38
  %583 = vmatpush1.msra.mxu0 %v37
  %584 = vmatprep.subr.mxu0 %v40
  %585 = vmatpush1.msra.mxu0 %v39
  %586 = vmatprep.subr.mxu0 %v42
  %587 = vmatpush1.msra.mxu0 %v41
  %588 = vmatprep.subr.mxu0 %v44
  %589 = vmatpush1.msra.mxu0 %v43
  %590 = vmatprep.subr.mxu0 %v46
  %591 = vmatpush1.msra.mxu0 %v45
  %592 = vmatprep.subr.mxu0 %v48
  %593 = vmatpush1.msra.mxu0 %v47
  %594 = vmatprep.subr.mxu0 %v50
  %595 = vmatpush1.msra.mxu0 %v49
  %596 = vmatprep.subr.mxu0 %v52
  %597 = vmatpush1.msra.mxu0 %v51
  %598 = vmatprep.subr.mxu0 %v54
  %599 = vmatpush1.msra.mxu0 %v53
  %600 = vmatprep.subr.mxu0 %v56
  %601 = vmatpush1.msra.mxu0 %v55
  %602 = vmatprep.subr.mxu0 %v58
  %603 = vmatpush1.msra.mxu0 %v57
  %604 = vmatprep.subr.mxu0 %v60
  %605 = vmatpush1.msra.mxu0 %v59
  %606 = vmatprep.subr.mxu0 %v62
  %607 = vmatpush1.msra.mxu0 %v61
  %608 = vmatprep.subr.mxu0 %v64
  %609 = vmatpush1.msra.mxu0 %v63
  %610 = vmatprep.subr.mxu0 %v66
  %611 = vmatpush1.msra.mxu0 %v65
  %612 = vmatprep.subr.mxu0 0.0
  %613 = vmatpush1.msra.mxu0 0.0
  %614 = vmatprep.subr.mxu0 0.0
  %615 = vmatpush1.msra.mxu0 0.0
  %616 = vmatprep.subr.mxu0 0.0
  %617 = vmatpush1.msra.mxu0 0.0
  %618 = vmatprep.subr.mxu0 0.0
  %619 = vmatpush1.msra.mxu0 0.0
  %620 = vmatprep.subr.mxu0 0.0
  %621 = vmatpush1.msra.mxu0 0.0
  %622 = vmatprep.subr.mxu0 0.0
  %623 = vmatpush1.msra.mxu0 0.0
  %624 = vmatprep.subr.mxu0 0.0
  %625 = vmatpush1.msra.mxu0 0.0
  %626 = vmatprep.subr.mxu0 0.0
  %627 = vmatpush1.msra.mxu0 0.0
  %628 = vmatprep.mubr.f32.mxu0 %v562
  %629 = vmatmul.mubr.f32.gmra.mrb[0].mxu0 %v556
  %v630 = vpop.f32.mrb[0].mxu0
  %v631 = vadd.f32 0.0, %v630
  %v632 = vpop.f32.mrb[0].mxu0
  %v633 = vadd.f32 0.0, %v632
  %634 = vdwg.mxu0
  %v635 = vadd.f32 %v559, %v631
  %v636 = vadd.f32 %v560, %v633
  %v637 = vtanh.pop %v635
  %v638 = vtanh.pop %v636
  %s639 = scalar_lea.vmem %s0, 128
  %v640 = vld [vmem:[%s639] sm:$0xff]
  %v641 = vld [vmem:[%s639 + $0x8] sm:$0xff]
  %v643 = vsel %vm74, %v638, 0
  %645 = vmatprep.subr.mxu0 %v20
  %646 = vmatpush1.msra.mxu0 %v19
  %647 = vmatprep.subr.mxu0 %v22
  %648 = vmatpush1.msra.mxu0 %v21
  %649 = vmatprep.subr.mxu0 %v24
  %650 = vmatpush1.msra.mxu0 %v23
  %651 = vmatprep.subr.mxu0 %v26
  %652 = vmatpush1.msra.mxu0 %v25
  %653 = vmatprep.subr.mxu0 %v28
  %654 = vmatpush1.msra.mxu0 %v27
  %655 = vmatprep.subr.mxu0 %v30
  %656 = vmatpush1.msra.mxu0 %v29
  %657 = vmatprep.subr.mxu0 %v32
  %658 = vmatpush1.msra.mxu0 %v31
  %659 = vmatprep.subr.mxu0 %v34
  %660 = vmatpush1.msra.mxu0 %v33
  %661 = vmatprep.subr.mxu0 %v36
  %662 = vmatpush1.msra.mxu0 %v35
  %663 = vmatprep.subr.mxu0 %v38
  %664 = vmatpush1.msra.mxu0 %v37
  %665 = vmatprep.subr.mxu0 %v40
  %666 = vmatpush1.msra.mxu0 %v39
  %667 = vmatprep.subr.mxu0 %v42
  %668 = vmatpush1.msra.mxu0 %v41
  %669 = vmatprep.subr.mxu0 %v44
  %670 = vmatpush1.msra.mxu0 %v43
  %671 = vmatprep.subr.mxu0 %v46
  %672 = vmatpush1.msra.mxu0 %v45
  %673 = vmatprep.subr.mxu0 %v48
  %674 = vmatpush1.msra.mxu0 %v47
  %675 = vmatprep.subr.mxu0 %v50
  %676 = vmatpush1.msra.mxu0 %v49
  %677 = vmatprep.subr.mxu0 %v52
  %678 = vmatpush1.msra.mxu0 %v51
  %679 = vmatprep.subr.mxu0 %v54
  %680 = vmatpush1.msra.mxu0 %v53
  %681 = vmatprep.subr.mxu0 %v56
  %682 = vmatpush1.msra.mxu0 %v55
  %683 = vmatprep.subr.mxu0 %v58
  %684 = vmatpush1.msra.mxu0 %v57
  %685 = vmatprep.subr.mxu0 %v60
  %686 = vmatpush1.msra.mxu0 %v59
  %687 = vmatprep.subr.mxu0 %v62
  %688 = vmatpush1.msra.mxu0 %v61
  %689 = vmatprep.subr.mxu0 %v64
  %690 = vmatpush1.msra.mxu0 %v63
  %691 = vmatprep.subr.mxu0 %v66
  %692 = vmatpush1.msra.mxu0 %v65
  %693 = vmatprep.subr.mxu0 0.0
  %694 = vmatpush1.msra.mxu0 0.0
  %695 = vmatprep.subr.mxu0 0.0
  %696 = vmatpush1.msra.mxu0 0.0
  %697 = vmatprep.subr.mxu0 0.0
  %698 = vmatpush1.msra.mxu0 0.0
  %699 = vmatprep.subr.mxu0 0.0
  %700 = vmatpush1.msra.mxu0 0.0
  %701 = vmatprep.subr.mxu0 0.0
  %702 = vmatpush1.msra.mxu0 0.0
  %703 = vmatprep.subr.mxu0 0.0
  %704 = vmatpush1.msra.mxu0 0.0
  %705 = vmatprep.subr.mxu0 0.0
  %706 = vmatpush1.msra.mxu0 0.0
  %707 = vmatprep.subr.mxu0 0.0
  %708 = vmatpush1.msra.mxu0 0.0
  %709 = vmatprep.mubr.f32.mxu0 %v643
  %710 = vmatmul.mubr.f32.gmra.mrb[0].mxu0 %v637
  %v711 = vpop.f32.mrb[0].mxu0
  %v712 = vadd.f32 0.0, %v711
  %v713 = vpop.f32.mrb[0].mxu0
  %v714 = vadd.f32 0.0, %v713
  %715 = vdwg.mxu0
  %v716 = vadd.f32 %v640, %v712
  %v717 = vadd.f32 %v641, %v714
  %v718 = vtanh.pop %v716
  %v719 = vtanh.pop %v717
  %s720 = scalar_lea.vmem %s0, 144
  %v721 = vld [vmem:[%s720] sm:$0xff]
  %v722 = vld [vmem:[%s720 + $0x8] sm:$0xff]
  %v724 = vsel %vm74, %v719, 0
  %726 = vmatprep.subr.mxu0 %v20
  %727 = vmatpush1.msra.mxu0 %v19
  %728 = vmatprep.subr.mxu0 %v22
  %729 = vmatpush1.msra.mxu0 %v21
  %730 = vmatprep.subr.mxu0 %v24
  %731 = vmatpush1.msra.mxu0 %v23
  %732 = vmatprep.subr.mxu0 %v26
  %733 = vmatpush1.msra.mxu0 %v25
  %734 = vmatprep.subr.mxu0 %v28
  %735 = vmatpush1.msra.mxu0 %v27
  %736 = vmatprep.subr.mxu0 %v30
  %737 = vmatpush1.msra.mxu0 %v29
  %738 = vmatprep.subr.mxu0 %v32
  %739 = vmatpush1.msra.mxu0 %v31
  %740 = vmatprep.subr.mxu0 %v34
  %741 = vmatpush1.msra.mxu0 %v33
  %742 = vmatprep.subr.mxu0 %v36
  %743 = vmatpush1.msra.mxu0 %v35
  %744 = vmatprep.subr.mxu0 %v38
  %745 = vmatpush1.msra.mxu0 %v37
  %746 = vmatprep.subr.mxu0 %v40
  %747 = vmatpush1.msra.mxu0 %v39
  %748 = vmatprep.subr.mxu0 %v42
  %749 = vmatpush1.msra.mxu0 %v41
  %750 = vmatprep.subr.mxu0 %v44
  %751 = vmatpush1.msra.mxu0 %v43
  %752 = vmatprep.subr.mxu0 %v46
  %753 = vmatpush1.msra.mxu0 %v45
  %754 = vmatprep.subr.mxu0 %v48
  %755 = vmatpush1.msra.mxu0 %v47
  %756 = vmatprep.subr.mxu0 %v50
  %757 = vmatpush1.msra.mxu0 %v49
  %758 = vmatprep.subr.mxu0 %v52
  %759 = vmatpush1.msra.mxu0 %v51
  %760 = vmatprep.subr.mxu0 %v54
  %761 = vmatpush1.msra.mxu0 %v53
  %762 = vmatprep.subr.mxu0 %v56
  %763 = vmatpush1.msra.mxu0 %v55
  %764 = vmatprep.subr.mxu0 %v58
  %765 = vmatpush1.msra.mxu0 %v57
  %766 = vmatprep.subr.mxu0 %v60
  %767 = vmatpush1.msra.mxu0 %v59
  %768 = vmatprep.subr.mxu0 %v62
  %769 = vmatpush1.msra.mxu0 %v61
  %770 = vmatprep.subr.mxu0 %v64
  %771 = vmatpush1.msra.mxu0 %v63
  %772 = vmatprep.subr.mxu0 %v66
  %773 = vmatpush1.msra.mxu0 %v65
  %774 = vmatprep.subr.mxu0 0.0
  %775 = vmatpush1.msra.mxu0 0.0
  %776 = vmatprep.subr.mxu0 0.0
  %777 = vmatpush1.msra.mxu0 0.0
  %778 = vmatprep.subr.mxu0 0.0
  %779 = vmatpush1.msra.mxu0 0.0
  %780 = vmatprep.subr.mxu0 0.0
  %781 = vmatpush1.msra.mxu0 0.0
  %782 = vmatprep.subr.mxu0 0.0
  %783 = vmatpush1.msra.mxu0 0.0
  %784 = vmatprep.subr.mxu0 0.0
  %785 = vmatpush1.msra.mxu0 0.0
  %786 = vmatprep.subr.mxu0 0.0
  %787 = vmatpush1.msra.mxu0 0.0
  %788 = vmatprep.subr.mxu0 0.0
  %789 = vmatpush1.msra.mxu0 0.0
  %790 = vmatprep.mubr.f32.mxu0 %v724
  %791 = vmatmul.mubr.f32.gmra.mrb[0].mxu0 %v718
  %v792 = vpop.f32.mrb[0].mxu0
  %v793 = vadd.f32 0.0, %v792
  %v794 = vpop.f32.mrb[0].mxu0
  %v795 = vadd.f32 0.0, %v794
  %796 = vdwg.mxu0
  %v797 = vadd.f32 %v721, %v793
  %v798 = vadd.f32 %v722, %v795
  %v799 = vtanh.pop %v797
  %v800 = vtanh.pop %v798
  %v801 = vld [vmem:[%s2] sm:$0x3]
  %v803 = vlaneseq
  %v804 = vshrl.u32 %v803, 7
  %v805 = vsub.s32 0, %v804
  %v806 = vrot.slane %v801, %v805
  %v807 = vlaneseq
  %v808 = vshrl.u32 %v807, 7
  %v809 = vsub.s32 1, %v808
  %v810 = vrot.slane %v801, %v809
  %v813 = vmul.f32 %v799, %v806
  %v814 = vmul.f32 %v800, %v810
  %v815 = vsel %vm74, %v814, 0.0
  %v816 = vadd.f32 %v813, %v815
  %817 = vadd.xlane.f32.xlu0 %v816
  %v818 = vpop.xlane.xlu0 %817
  %v819 = vld [vmem:[#allocation2] sm:$0x1]
  %v821 = vlaneseq
  %v822 = vshrl.u32 %v821, 7
  %v823 = vsub.s32 0, %v822
  %v824 = vrot.slane %v819, %v823
  %v826 = vadd.f32 %v818, %v824
  %vm827 = vcmask 7168
  %828 = vst.msk [vmem:[%s4] sm:$0xff] %vm827, %v826
  // Predicated region
  $region18: #{rnn_model_forward.1} parent=0 // pred_check
    _
  $region19: #{rnn_model_forward.1} parent=0 // pred_check_branch
    %830 = sbr.rel (0) target = $region21
  $region20: #{rnn_model_forward.1} parent=0 // pred_region
    _
  $region21: #{rnn_model_forward.1} parent=0 // pred_fallthru
    _
  // Predicated region
  $region22: #{rnn_model_forward.1} parent=0 // pred_check
    _
  $region23: #{rnn_model_forward.1} parent=0 // pred_check_branch
    %832 = sbr.rel (0) target = $region25
  $region24: #{rnn_model_forward.1} parent=0 // pred_region
    _
  $region25: #{rnn_model_forward.1} parent=0 // pred_fallthru
    _

</llo_original>
